<compile_context>
chip_gen: v7x
topology: tpu7x:2x2x1
jax: 0.10.0
libtpu: 0.0.40
codegen_flags: <defaults>
</compile_context>

<pallas_src>
import functools

import jax
import jax.numpy as jnp
from jax import lax
from jax.experimental import pallas as pl
from jax.experimental.pallas import tpu as pltpu


def _round_up(x: int, m: int) -> int:
    return ((x + m - 1) // m) * m


def _vmem_capacity_bytes() -> int:
    try:
        return int(pltpu.get_tpu_info().vmem_capacity_bytes)
    except Exception:
        return 64 << 20  # conservative fallback (v7x per-TensorCore size)


def _matmul_kernel(a_ref, w_ref, o_ref, acc_ref):
    """One (tm, tn) output tile: A[tm, tk] @ W[tn, tk]^T accumulated over the K axis."""
    k = pl.program_id(2)

    # NT-form contraction: weight stays [N, K]; MXU handles the transposed operand
    # natively (same as the q @ k^T pattern), so no per-step vxpose is emitted.
    prod = lax.dot_general(
        a_ref[...],
        w_ref[...],
        dimension_numbers=(((1,), (1,)), ((), ())),
        preferred_element_type=jnp.float32,
    )

    @pl.when(k == 0)
    def _():
        acc_ref[...] = prod            # direct write: saves a memset + extra VMEM read

    @pl.when(k > 0)
    def _():
        acc_ref[...] += prod

    @pl.when(k == pl.num_programs(2) - 1)
    def _():
        o_ref[...] = acc_ref[...].astype(o_ref.dtype)


@functools.partial(jax.jit, static_argnames=("tm", "tn", "tk", "use_bf16_mxu"))
def column_parallel_linear_forward(input_, weight, *, tm=1024, tn=1024, tk=512,
                                   use_bf16_mxu=True):
    """Forward of ColumnParallelLinear (world_size == 1, bias=None).

    Args:
      input_: [S, B, H]  (sequence, batch, hidden)
      weight: [O, H]     (output_size_per_partition, input_size)
      use_bf16_mxu: cast f32 operands to bf16 for the MXU (f32 accumulation kept).

    Returns:
      (output [S, B, O], output_bias=None)
    """
    S, B, H = input_.shape
    O, H_w = weight.shape
    assert H == H_w, "weight inner dim must match input hidden dim"
    M, K, N = S * B, H, O

    in_dtype = input_.dtype
    if use_bf16_mxu and in_dtype == jnp.float32:
        compute_dtype = jnp.bfloat16   # bf16 operands, f32 accumulate on the MXU
    else:
        compute_dtype = in_dtype
    cbytes = jnp.dtype(compute_dtype).itemsize
    out_bytes = jnp.dtype(in_dtype).itemsize
    sub = {4: 8, 2: 16, 1: 32}[cbytes]  # min sublane multiple for the compute dtype

    # --- tile clamping (no over-padding for small problems) -------------------
    tm_ = min(_round_up(tm, sub), _round_up(M, sub))
    tn_ = min(_round_up(tn, 128), _round_up(N, 128))
    tk_ = min(_round_up(tk, 128), _round_up(K, 128))

    # Snap tk_ to a divisor of round_up(K,128) when that avoids padding K.
    k_lanes = _round_up(K, 128) // 128
    d = tk_ // 128
    while d > 1 and k_lanes % d != 0:
        d -= 1
    if k_lanes % (tk_ // 128) == 0 or d >= 2:
        tk_ = d * 128

    # Megacore: keep >= 2 blocks along a parallel axis so both v7x TCs get work.
    if pl.cdiv(M, tm_) == 1 and pl.cdiv(N, tn_) == 1:
        tn_half = _round_up(pl.cdiv(N, 2), 128)
        if 128 <= tn_half < tn_:
            tn_ = tn_half

    # --- generation-aware VMEM budget -----------------------------------------
    budget = int(0.8 * _vmem_capacity_bytes())

    def live(tm_, tn_, tk_):
        # double-buffered A/W tiles + f32 accumulator + double-buffered output tile
        return ((2 * tm_ * tk_ + 2 * tn_ * tk_) * cbytes
                + tm_ * tn_ * 4 + 2 * tm_ * tn_ * out_bytes)

    while live(tm_, tn_, tk_) > budget and tk_ > 128:
        tk_ = max(128, (tk_ // 2) // 128 * 128)
    while live(tm_, tn_, tk_) > budget and tn_ > 128:
        tn_ = max(128, (tn_ // 2) // 128 * 128)
    while live(tm_, tn_, tk_) > budget and tm_ > sub:
        tm_ = max(sub, (tm_ // 2) // sub * sub)

    vmem_limit = min(budget, max(int(1.5 * live(tm_, tn_, tk_)) + (8 << 20), 32 << 20))

    # --- operand prep: cast once in the wrapper, pad K only if needed ---------
    Kp = _round_up(K, tk_)
    a = input_.reshape(M, K)           # flatten [S, B, H] -> [M, K]
    w = weight                         # kept as [N, K]; no transpose
    if a.dtype != compute_dtype:
        a = a.astype(compute_dtype)
    if w.dtype != compute_dtype:
        w = w.astype(compute_dtype)
    if Kp != K:
        a = jnp.pad(a, ((0, 0), (0, Kp - K)))
        w = jnp.pad(w, ((0, 0), (0, Kp - K)))
    # M/N are NOT padded: Pallas clips partial edge blocks (OOB reads only feed
    # OOB output rows/cols, and OOB output writes are discarded).

    grid = (pl.cdiv(M, tm_), pl.cdiv(N, tn_), Kp // tk_)

    cost = pl.CostEstimate(
        flops=2 * M * N * K,
        transcendentals=0,
        bytes_accessed=M * Kp * cbytes + N * Kp * cbytes + M * N * out_bytes,
    )

    out2d = pl.pallas_call(
        _matmul_kernel,
        out_shape=jax.ShapeDtypeStruct((M, N), in_dtype),
        grid_spec=pltpu.PrefetchScalarGridSpec(
            num_scalar_prefetch=0,
            grid=grid,
            in_specs=[
                pl.BlockSpec((tm_, tk_), lambda i, j, k: (i, k)),
                pl.BlockSpec((tn_, tk_), lambda i, j, k: (j, k)),
            ],
            out_specs=pl.BlockSpec((tm_, tn_), lambda i, j, k: (i, j)),
            scratch_shapes=[pltpu.VMEM((tm_, tn_), jnp.float32)],
        ),
        compiler_params=pltpu.CompilerParams(
            dimension_semantics=("parallel", "parallel", "arbitrary"),
            vmem_limit_bytes=vmem_limit,
        ),
        cost_estimate=cost,
    )(a, w)

    output = out2d.reshape(S, B, N)
    output_bias = None  # module registers bias=None; skip_bias_add path also returns None
    # TODO(synk): tensor-parallel collectives (copy_to / gather_from region) are
    # identities at world_size==1 and are not emitted here.
    return output, output_bias


if __name__ == "__main__":
    key = jax.random.PRNGKey(0)
    k_in, k_w, k_in2, k_w2 = jax.random.split(key, 4)

    # Case 1: tile-aligned small shapes, [sequence, batch, hidden] convention.
    S, B, H = 8, 2, 256          # sequence, batch, input_size (hidden)
    O = 256                      # output_size_per_partition (world_size == 1)
    input_ = jax.random.normal(k_in, (S, B, H), dtype=jnp.float32)
    weight = 0.02 * jax.random.normal(k_w, (O, H), dtype=jnp.float32)

    out, out_bias = column_parallel_linear_forward(input_, weight)
    out = jax.block_until_ready(out)
    # Reference matched to the bf16-operand / f32-accumulate MXU path.
    ref = jnp.einsum(
        "sbh,oh->sbo",
        input_.astype(jnp.bfloat16).astype(jnp.float32),
        weight.astype(jnp.bfloat16).astype(jnp.float32),
        preferred_element_type=jnp.float32,
    )
    assert out.shape == (S, B, O)
    assert out_bias is None
    assert jnp.allclose(out, ref, atol=1e-2, rtol=1e-2)

    # Case 2: non-tile-aligned shapes (exercises K pad + partial M/N edge blocks).
    S2, B2, H2, O2 = 5, 3, 200, 300
    input2 = jax.random.normal(k_in2, (S2, B2, H2), dtype=jnp.float32)
    weight2 = 0.02 * jax.random.normal(k_w2, (O2, H2), dtype=jnp.float32)
    out2, out_bias2 = column_parallel_linear_forward(input2, weight2)
    out2 = jax.block_until_ready(out2)
    ref2 = jnp.einsum(
        "sbh,oh->sbo",
        input2.astype(jnp.bfloat16).astype(jnp.float32),
        weight2.astype(jnp.bfloat16).astype(jnp.float32),
        preferred_element_type=jnp.float32,
    )
    assert out2.shape == (S2, B2, O2)
    assert out_bias2 is None
    assert jnp.allclose(out2, ref2, atol=1e-2, rtol=1e-2)

    # Case 3: exact f32 path (use_bf16_mxu=False) against an f32 reference.
    out3, _ = column_parallel_linear_forward(input_, weight, use_bf16_mxu=False)
    out3 = jax.block_until_ready(out3)
    ref3 = jnp.einsum("sbh,oh->sbo", input_, weight, precision=lax.Precision.HIGHEST)
    assert jnp.allclose(out3, ref3, atol=5e-3, rtol=5e-3)

    print("KERNEL_OK")
</pallas_src>

<mosaic_0001>
module attributes {stable_mosaic.version = 11 : i64} {
  func.func @_matmul_kernel(%arg0: i32, %arg1: i32, %arg2: i32, %arg3: memref<16x256xbf16, #tpu.memory_space<vmem>>, %arg4: memref<128x256xbf16, #tpu.memory_space<vmem>>, %arg5: memref<16x128xf32, #tpu.memory_space<vmem>>, %arg6: memref<16x128xf32, #tpu.memory_space<vmem>>) attributes {dimension_semantics = [#tpu.dimension_semantics<parallel>, #tpu.dimension_semantics<parallel>, #tpu.dimension_semantics<arbitrary>], iteration_bounds = array<i64: 1, 2, 1>, scalar_prefetch = 0 : i64, scratch_operands = 1 : i64, tpu.core_type = #tpu.core_type<tc>, window_params = [{transform_indices = @transform_0, window_bounds = array<i64: 16, 256>}, {transform_indices = @transform_1, window_bounds = array<i64: 128, 256>}, {transform_indices = @transform_2, window_bounds = array<i64: 16, 128>}]} {
    %c0 = arith.constant 0 : index
    %c0_0 = arith.constant 0 : index
    %0 = vector.load %arg3[%c0, %c0_0] : memref<16x256xbf16, #tpu.memory_space<vmem>>, vector<16x256xbf16>
    %c0_1 = arith.constant 0 : index
    %c0_2 = arith.constant 0 : index
    %1 = vector.load %arg4[%c0_1, %c0_2] : memref<128x256xbf16, #tpu.memory_space<vmem>>, vector<128x256xbf16>
    %cst = arith.constant dense<0.000000e+00> : vector<16x128xf32>
    %2 = tpu.matmul %0, %1, %cst {dimension_numbers = #tpu.dot_dimension_numbers<[1], [1], [0], [0], [0, 0, 1, 0], [], []>} : vector<16x256xbf16>, vector<128x256xbf16>, vector<16x128xf32> -> vector<16x128xf32>
    %c0_i32 = arith.constant 0 : i32
    %3 = arith.cmpi eq, %arg2, %c0_i32 : i32
    %4 = arith.extui %3 : i1 to i32
    %c0_i32_3 = arith.constant 0 : i32
    %5 = arith.cmpi ne, %4, %c0_i32_3 : i32
    scf.if %5 {
      %c0_8 = arith.constant 0 : index
      %c0_9 = arith.constant 0 : index
      %12 = vector.load %arg6[%c0_8, %c0_9] : memref<16x128xf32, #tpu.memory_space<vmem>>, vector<16x128xf32>
      tpu.vector_store %arg6[%c0_8, %c0_9], %2 {strides = array<i32>} : memref<16x128xf32, #tpu.memory_space<vmem>>, vector<16x128xf32>,
    } else {
    }
    %c0_i32_4 = arith.constant 0 : i32
    %6 = arith.cmpi sgt, %arg2, %c0_i32_4 : i32
    %7 = arith.extui %6 : i1 to i32
    %c0_i32_5 = arith.constant 0 : i32
    %8 = arith.cmpi ne, %7, %c0_i32_5 : i32
    scf.if %8 {
      %c0_8 = arith.constant 0 : index
      %c0_9 = arith.constant 0 : index
      %12 = vector.load %arg6[%c0_8, %c0_9] : memref<16x128xf32, #tpu.memory_space<vmem>>, vector<16x128xf32>
      %13 = arith.addf %12, %2 : vector<16x128xf32>
      %c0_10 = arith.constant 0 : index
      %c0_11 = arith.constant 0 : index
      %14 = vector.load %arg6[%c0_10, %c0_11] : memref<16x128xf32, #tpu.memory_space<vmem>>, vector<16x128xf32>
      tpu.vector_store %arg6[%c0_10, %c0_11], %13 {strides = array<i32>} : memref<16x128xf32, #tpu.memory_space<vmem>>, vector<16x128xf32>,
    } else {
    }
    %c0_i32_6 = arith.constant 0 : i32
    %9 = arith.cmpi eq, %arg2, %c0_i32_6 : i32
    %10 = arith.extui %9 : i1 to i32
    %c0_i32_7 = arith.constant 0 : i32
    %11 = arith.cmpi ne, %10, %c0_i32_7 : i32
    scf.if %11 {
      %c0_8 = arith.constant 0 : index
      %c0_9 = arith.constant 0 : index
      %12 = vector.load %arg6[%c0_8, %c0_9] : memref<16x128xf32, #tpu.memory_space<vmem>>, vector<16x128xf32>
      %c0_10 = arith.constant 0 : index
      %c0_11 = arith.constant 0 : index
      %13 = vector.load %arg5[%c0_10, %c0_11] : memref<16x128xf32, #tpu.memory_space<vmem>>, vector<16x128xf32>
      tpu.vector_store %arg5[%c0_10, %c0_11], %12 {strides = array<i32>} : memref<16x128xf32, #tpu.memory_space<vmem>>, vector<16x128xf32>,
    } else {
    }
    return
  }
  func.func @transform_0(%arg0: i32, %arg1: i32, %arg2: i32) -> (i32, i32) {
    %c0_i32 = arith.constant 0 : i32
    return %arg0, %arg2 : i32, i32
  }
  func.func @transform_1(%arg0: i32, %arg1: i32, %arg2: i32) -> (i32, i32) {
    %c0_i32 = arith.constant 0 : i32
    return %arg1, %arg2 : i32, i32
  }
  func.func @transform_2(%arg0: i32, %arg1: i32, %arg2: i32) -> (i32, i32) {
    %c0_i32 = arith.constant 0 : i32
    return %arg0, %arg1 : i32, i32
  }
}

</mosaic_0001>

<llo_original>
// kernel: column_parallel_linear_forward.1
$region0: #{column_parallel_linear_forward.1}
  #allocation0 [shape = 'u32[]', space=smem, size = 0x4, offset = 0x4, fixed_abs, tag = 'smem constant byte address 0x4 - core index']
  #allocation1 [shape = 'u32[144,128]{1,0:T(1,128)}', space=vmem, size = 0x12000, scoped, tag = 'internal scratch']
  #allocation2 [shape = 'f32[16,128]{1,0:T(8,128)}', space=vmem, size = 0x2000, scoped, tag = 'scratch operand']
  %s0 = inlined_call_operand.vmem [shape: bf16[16,256], index: 0, kind: input, shape index: {}]
  %s1 = inlined_call_operand.vmem [shape: bf16[256,256], index: 1, kind: input, shape index: {}]
  %s2 = inlined_call_operand.vmem [shape: f32[16,256], index: 2, kind: output, shape index: {}]
  %s3 = sld [smem:[#allocation0]]
  $region87: #{column_parallel_linear_forward.1} parent=0
    _
  %s5 = ssub.s32 1, %s3
  %s6 = scalar_select 0, %s5, %s3
  $region1: #{column_parallel_linear_forward.1} parent=0
    #allocation3 [shape = 'u8[16384]{0}', space=vmem, size = 0x4000, scoped, tag = 'output window, operand 0']
    loop: start=0, step=1, limit=4
    $region2: #{column_parallel_linear_forward.1} parent=1 // loop_pre_header
      _
    $region3: #{column_parallel_linear_forward.1} parent=1 // loop_header
      %s8 = sphi 0, %s12
      %p9 = scmp.ge.s32.totalorder %s8, 4
      %s15 = sphi 0, %s34
      %s16 = sphi 0, %s30
      %s17 = sphi 0, %s26
      %s18 = sphi 0, %s15
      %s19 = sphi 0, %s16
      %s20 = sphi 0, %s17
      %s21 = sphi 0, %s18
      %s22 = sphi 0, %s19
      %s23 = sphi 0, %s20
      %s39 = sphi 0, %s41
      %s42 = sphi 0, %s39
      %s43 = sphi 0, %s42
      %s59 = sphi 0, %s43
      %s67 = sphi 0, %s69
      %s70 = sphi 0, %s67
      %s71 = sphi 0, %s70
      %s87 = sphi 0, %s71
      %s95 = sphi 0, %s97
      %s98 = sphi 0, %s95
      %s99 = sphi 0, %s98
      %s115 = sphi 0, %s99
    $region4: #{column_parallel_linear_forward.1} parent=1 // loop_header_branch
      %11 = sbr.rel (%p9) target = $region8
    $region5: #{column_parallel_linear_forward.1} parent=1 // loop_body
      %s13 = ssub.s32 %s8, 1
      %s14 = ssub.s32 %s8, 2
      %s24 = sadd.s32 1, %s17
      %p25 = scmp.ge.s32.totalorder %s24, 1
      %s26 = scalar_select %p25, 0, %s24
      %s27 = sadd.s32 1, %s16
      %s28 = scalar_select %p25, %s27, %s16
      %p29 = scmp.ge.s32.totalorder %s28, 2
      %s30 = scalar_select %p29, 0, %s28
      %s31 = sadd.s32 1, %s15
      %s32 = scalar_select %p29, %s31, %s15
      %p33 = scmp.ge.s32.totalorder %s32, 1
      %s34 = scalar_select %p33, 0, %s32
      %s35 = ssub.s32 %s15, %s34
      %s36 = ssub.s32 %s17, %s26
      %s37 = sor.u32 %s35, %s36
      %p38 = scmp.eq.s32.totalorder %s37, 0
      %s40 = sadd.s32 %s39, 1
      %s41 = scalar_select %p38, %s39, %s40
      %p44 = pneg %p38
      %p45 = scmp.eq.s32.totalorder %s8, 1
      %p46 = por %p44, %p45
      %p47 = scmp.ne.s32.totalorder %s39, %s42
      %p48 = scmp.eq.s32.totalorder %s8, 0
      %p49 = por %p47, %p48
      %p50 = scmp.ne.s32.totalorder %s39, %s42
      %p51 = scmp.eq.s32.totalorder %s13, 1
      %p52 = por %p50, %p51
      %p53 = scmp.ne.s32.totalorder %s42, %s43
      %p54 = scmp.eq.s32.totalorder %s13, 0
      %p55 = por %p53, %p54
      %p56 = scmp.ne.s32.totalorder %s42, %s43
      %p57 = scmp.eq.s32.totalorder %s14, 1
      %p58 = por %p56, %p57
      %p60 = scmp.ne.s32.totalorder %s43, %s59
      %p61 = scmp.eq.s32.totalorder %s14, 0
      %p62 = por %p60, %p61
      %s63 = ssub.s32 %s16, %s30
      %s64 = ssub.s32 %s17, %s26
      %s65 = sor.u32 %s63, %s64
      %p66 = scmp.eq.s32.totalorder %s65, 0
      %s68 = sadd.s32 %s67, 1
      %s69 = scalar_select %p66, %s67, %s68
      %p72 = pneg %p66
      %p73 = scmp.eq.s32.totalorder %s8, 1
      %p74 = por %p72, %p73
      %p75 = scmp.ne.s32.totalorder %s67, %s70
      %p76 = scmp.eq.s32.totalorder %s8, 0
      %p77 = por %p75, %p76
      %p78 = scmp.ne.s32.totalorder %s67, %s70
      %p79 = scmp.eq.s32.totalorder %s13, 1
      %p80 = por %p78, %p79
      %p81 = scmp.ne.s32.totalorder %s70, %s71
      %p82 = scmp.eq.s32.totalorder %s13, 0
      %p83 = por %p81, %p82
      %p84 = scmp.ne.s32.totalorder %s70, %s71
      %p85 = scmp.eq.s32.totalorder %s14, 1
      %p86 = por %p84, %p85
      %p88 = scmp.ne.s32.totalorder %s71, %s87
      %p89 = scmp.eq.s32.totalorder %s14, 0
      %p90 = por %p88, %p89
      %s91 = ssub.s32 %s15, %s34
      %s92 = ssub.s32 %s16, %s30
      %s93 = sor.u32 %s91, %s92
      %p94 = scmp.eq.s32.totalorder %s93, 0
      %s96 = sadd.s32 %s95, 1
      %s97 = scalar_select %p94, %s95, %s96
      %p100 = pneg %p94
      %p101 = scmp.eq.s32.totalorder %s8, 1
      %p102 = por %p100, %p101
      %p103 = scmp.ne.s32.totalorder %s95, %s98
      %p104 = scmp.eq.s32.totalorder %s8, 0
      %p105 = por %p103, %p104
      %p106 = scmp.ne.s32.totalorder %s95, %s98
      %p107 = scmp.eq.s32.totalorder %s13, 1
      %p108 = por %p106, %p107
      %p109 = scmp.ne.s32.totalorder %s98, %s99
      %p110 = scmp.eq.s32.totalorder %s13, 0
      %p111 = por %p109, %p110
      %p112 = scmp.ne.s32.totalorder %s98, %s99
      %p113 = scmp.eq.s32.totalorder %s14, 1
      %p114 = por %p112, %p113
      %p116 = scmp.ne.s32.totalorder %s99, %s115
      %p117 = scmp.eq.s32.totalorder %s14, 0
      %p118 = por %p116, %p117
      %p119 = scmp.le.s32.totalorder 1, %s8
      %p120 = scmp.lt.s32.totalorder %s8, 3
      %p121 = pnand %p119, %p120
      %p122 = pneg %p121
      // Predicated region
      $region9: #{column_parallel_linear_forward.1} parent=5 // pred_check
        _
      $region10: #{column_parallel_linear_forward.1} parent=5 // pred_check_branch
        %124 = sbr.rel (%p121) target = $region12
      $region11: #{column_parallel_linear_forward.1} parent=5 // pred_region
        %s125 = ssub.s32 %s8, 1
        // Predicated region
        $region13: #{column_parallel_linear_forward.1} parent=11 // pred_check
          %p126 = pneg %p55
        $region14: #{column_parallel_linear_forward.1} parent=11 // pred_check_branch
          %128 = sbr.rel (%p126) target = $region16
        $region15: #{column_parallel_linear_forward.1} parent=11 // pred_region
          %s129 = smul.u32 2, %s18
          %s130 = smul.u32 2, %s20
          %p131 = scmp.lt.s32.totalorder %s129, 1
          %s132 = scalar_select %p131, %s129, 1
          %p133 = scmp.lt.s32.totalorder %s130, 1
          %s134 = scalar_select %p133, %s130, 1
          %s135 = smul.addr %s132, 2
          %s136 = sadd.s32 %s134, %s135
          %s137 = smul.addr %s136, 4
          %s138 = scalar_lea.vmem %s0, %s137
          %s139 = smul.u32 2, %s18
          %s140 = smul.u32 2, %s20
        $region16: #{column_parallel_linear_forward.1} parent=11 // pred_fallthru
          _
      $region12: #{column_parallel_linear_forward.1} parent=5 // pred_fallthru
        _
      %p141 = scmp.lt.s32.totalorder %s8, 2
      // Predicated region
      $region17: #{column_parallel_linear_forward.1} parent=5 // pred_check
        %p142 = pneg %p141
      $region18: #{column_parallel_linear_forward.1} parent=5 // pred_check_branch
        %144 = sbr.rel (%p142) target = $region20
      $region19: #{column_parallel_linear_forward.1} parent=5 // pred_region
        // Predicated region
        $region21: #{column_parallel_linear_forward.1} parent=19 // pred_check
          %p145 = pneg %p77
        $region22: #{column_parallel_linear_forward.1} parent=19 // pred_check_branch
          %147 = sbr.rel (%p145) target = $region24
        $region23: #{column_parallel_linear_forward.1} parent=19 // pred_region
          %s148 = smul.u32 16, %s16
          %s149 = smul.u32 2, %s17
          %p150 = scmp.lt.s32.totalorder %s148, 31
          %s151 = scalar_select %p150, %s148, 31
          %p152 = scmp.lt.s32.totalorder %s149, 1
          %s153 = scalar_select %p152, %s149, 1
          %s154 = smul.addr %s151, 2
          %s155 = sadd.s32 %s153, %s154
          %s156 = smul.addr %s155, 4
          %s157 = scalar_lea.vmem %s1, %s156
          %s158 = smul.u32 16, %s16
          %s159 = smul.u32 2, %s17
        $region24: #{column_parallel_linear_forward.1} parent=19 // pred_fallthru
          _
      $region20: #{column_parallel_linear_forward.1} parent=5 // pred_fallthru
        _
      %p160 = scmp.le.s32.totalorder 1, %s8
      %p161 = scmp.lt.s32.totalorder %s8, 3
      %p162 = pnand %p160, %p161
      %p163 = pneg %p162
      // Predicated region
      $region25: #{column_parallel_linear_forward.1} parent=5 // pred_check
        _
      $region26: #{column_parallel_linear_forward.1} parent=5 // pred_check_branch
        %165 = sbr.rel (%p162) target = $region28
      $region27: #{column_parallel_linear_forward.1} parent=5 // pred_region
        %s166 = ssub.s32 %s8, 1
        %s167 = smul.u32 2, %s18
        %s168 = smul.u32 2, %s20
        %p169 = scmp.lt.s32.totalorder %s167, 1
        %s170 = scalar_select %p169, %s167, 1
        %p171 = scmp.lt.s32.totalorder %s168, 1
        %s172 = scalar_select %p171, %s168, 1
        %s173 = smul.addr %s170, 2
        %s174 = sadd.s32 %s172, %s173
        %s175 = smul.addr %s174, 4
        %s176 = scalar_lea.vmem %s0, %s175
        %p177 = pneg %p55
        %p178 = pneg %p52
        %s179 = smul.u32 16, %s19
        %s180 = smul.u32 2, %s20
        %p181 = scmp.lt.s32.totalorder %s179, 31
        %s182 = scalar_select %p181, %s179, 31
        %p183 = scmp.lt.s32.totalorder %s180, 1
        %s184 = scalar_select %p183, %s180, 1
        %s185 = smul.addr %s182, 2
        %s186 = sadd.s32 %s184, %s185
        %s187 = smul.addr %s186, 4
        %s188 = scalar_lea.vmem %s1, %s187
        %p189 = pneg %p83
        %p190 = pneg %p80
        %p191 = pneg %p111
        %p192 = pneg %p108
        %s193 = sand.u32 %s98, 1
        %s194 = sand.u32 %s98, 1
        %s195 = smul.addr %s194, 16
        %s196 = scalar_lea.vmem [#allocation3], %s195
        %s197 = smul.u32 2, %s18
        %s198 = smul.u32 2, %s20
        %p199 = scmp.lt.s32.totalorder %s197, 1
        %s200 = scalar_select %p199, %s197, 1
        %p201 = scmp.lt.s32.totalorder %s198, 1
        %s202 = scalar_select %p201, %s198, 1
        %s203 = smul.addr %s200, 2
        %s204 = sadd.s32 %s202, %s203
        %s205 = smul.addr %s204, 4
        %s206 = scalar_lea.vmem %s0, %s205
        %s207 = smul.u32 2, %s18
        %s208 = smul.u32 2, %s20
        %s209 = smul.u32 16, %s19
        %s210 = smul.u32 2, %s20
        %p211 = scmp.lt.s32.totalorder %s209, 31
        %s212 = scalar_select %p211, %s209, 31
        %p213 = scmp.lt.s32.totalorder %s210, 1
        %s214 = scalar_select %p213, %s210, 1
        %s215 = smul.addr %s212, 2
        %s216 = sadd.s32 %s214, %s215
        %s217 = smul.addr %s216, 4
        %s218 = scalar_lea.vmem %s1, %s217
        %s219 = smul.u32 16, %s19
        %s220 = smul.u32 2, %s20
        %s221 = smul.u32 2, %s18
        %v223 = vld [vmem:[%s206] sm:$0xff]
        %v224 = vld [vmem:[%s206 + $0x8] sm:$0xff]
        %v225 = vld [vmem:[%s218] sm:$0xff]
        %v226 = vld [vmem:[%s218 + $0x8] sm:$0xff]
        %v227 = vld [vmem:[%s218 + $0x10] sm:$0xff]
        %v228 = vld [vmem:[%s218 + $0x18] sm:$0xff]
        %v229 = vld [vmem:[%s218 + $0x20] sm:$0xff]
        %v230 = vld [vmem:[%s218 + $0x28] sm:$0xff]
        %v231 = vld [vmem:[%s218 + $0x30] sm:$0xff]
        %v232 = vld [vmem:[%s218 + $0x38] sm:$0xff]
        %v233 = vld [vmem:[%s218 + $0x40] sm:$0xff]
        %v234 = vld [vmem:[%s218 + $0x48] sm:$0xff]
        %v235 = vld [vmem:[%s218 + $0x50] sm:$0xff]
        %v236 = vld [vmem:[%s218 + $0x58] sm:$0xff]
        %v237 = vld [vmem:[%s218 + $0x60] sm:$0xff]
        %v238 = vld [vmem:[%s218 + $0x68] sm:$0xff]
        %v239 = vld [vmem:[%s218 + $0x70] sm:$0xff]
        %v240 = vld [vmem:[%s218 + $0x78] sm:$0xff]
        %v243 = vunpack.c.l.b16 %v223
        %v244 = vunpack.c.h.b16 %v223
        %v245 = vunpack.c.l.b16 %v224
        %v246 = vunpack.c.h.b16 %v224
        %v247 = vpack.c.b16 %v245, %v243
        %v248 = vpack.c.b16 %v246, %v244
        %v267 = vunpack.c.l.b16 %v225
        %v268 = vunpack.c.h.b16 %v225
        %v269 = vunpack.c.l.b16 %v226
        %v270 = vunpack.c.h.b16 %v226
        %v271 = vunpack.c.l.b16 %v227
        %v272 = vunpack.c.h.b16 %v227
        %v273 = vunpack.c.l.b16 %v228
        %v274 = vunpack.c.h.b16 %v228
        %v275 = vunpack.c.l.b16 %v229
        %v276 = vunpack.c.h.b16 %v229
        %v277 = vunpack.c.l.b16 %v230
        %v278 = vunpack.c.h.b16 %v230
        %v279 = vunpack.c.l.b16 %v231
        %v280 = vunpack.c.h.b16 %v231
        %v281 = vunpack.c.l.b16 %v232
        %v282 = vunpack.c.h.b16 %v232
        %v283 = vunpack.c.l.b16 %v233
        %v284 = vunpack.c.h.b16 %v233
        %v285 = vunpack.c.l.b16 %v234
        %v286 = vunpack.c.h.b16 %v234
        %v287 = vunpack.c.l.b16 %v235
        %v288 = vunpack.c.h.b16 %v235
        %v289 = vunpack.c.l.b16 %v236
        %v290 = vunpack.c.h.b16 %v236
        %v291 = vunpack.c.l.b16 %v237
        %v292 = vunpack.c.h.b16 %v237
        %v293 = vunpack.c.l.b16 %v238
        %v294 = vunpack.c.h.b16 %v238
        %v295 = vunpack.c.l.b16 %v239
        %v296 = vunpack.c.h.b16 %v239
        %v297 = vunpack.c.l.b16 %v240
        %v298 = vunpack.c.h.b16 %v240
        %v299 = vpack.c.b16 %v269, %v267
        %v300 = vpack.c.b16 %v270, %v268
        %v301 = vpack.c.b16 %v273, %v271
        %v302 = vpack.c.b16 %v274, %v272
        %v303 = vpack.c.b16 %v277, %v275
        %v304 = vpack.c.b16 %v278, %v276
        %v305 = vpack.c.b16 %v281, %v279
        %v306 = vpack.c.b16 %v282, %v280
        %v307 = vpack.c.b16 %v285, %v283
        %v308 = vpack.c.b16 %v286, %v284
        %v309 = vpack.c.b16 %v289, %v287
        %v310 = vpack.c.b16 %v290, %v288
        %v311 = vpack.c.b16 %v293, %v291
        %v312 = vpack.c.b16 %v294, %v292
        %v313 = vpack.c.b16 %v297, %v295
        %v314 = vpack.c.b16 %v298, %v296
        %331 = vmatprep.subr.bf16.mxu0 %v300
        %332 = vmatpush1.bf16.xpose.msra.mxu0 %v299
        %333 = vmatprep.subr.bf16.mxu0 %v302
        %334 = vmatpush1.bf16.xpose.msra.mxu0 %v301
        %335 = vmatprep.subr.bf16.mxu0 %v304
        %336 = vmatpush1.bf16.xpose.msra.mxu0 %v303
        %337 = vmatprep.subr.bf16.mxu0 %v306
        %338 = vmatpush1.bf16.xpose.msra.mxu0 %v305
        %339 = vmatprep.subr.bf16.mxu0 %v308
        %340 = vmatpush1.bf16.xpose.msra.mxu0 %v307
        %341 = vmatprep.subr.bf16.mxu0 %v310
        %342 = vmatpush1.bf16.xpose.msra.mxu0 %v309
        %343 = vmatprep.subr.bf16.mxu0 %v312
        %344 = vmatpush1.bf16.xpose.msra.mxu0 %v311
        %345 = vmatprep.subr.bf16.mxu0 %v314
        %346 = vmatpush1.bf16.xpose.msra.mxu0 %v313
        %347 = vmatprep.subr.bf16.mxu0 0
        %348 = vmatpush1.bf16.xpose.msra.mxu0 0
        %349 = vmatprep.subr.bf16.mxu0 0
        %350 = vmatpush1.bf16.xpose.msra.mxu0 0
        %351 = vmatprep.subr.bf16.mxu0 0
        %352 = vmatpush1.bf16.xpose.msra.mxu0 0
        %353 = vmatprep.subr.bf16.mxu0 0
        %354 = vmatpush1.bf16.xpose.msra.mxu0 0
        %355 = vmatprep.subr.bf16.mxu0 0
        %356 = vmatpush1.bf16.xpose.msra.mxu0 0
        %357 = vmatprep.subr.bf16.mxu0 0
        %358 = vmatpush1.bf16.xpose.msra.mxu0 0
        %359 = vmatprep.subr.bf16.mxu0 0
        %360 = vmatpush1.bf16.xpose.msra.mxu0 0
        %361 = vmatprep.subr.bf16.mxu0 0
        %362 = vmatpush1.bf16.xpose.msra.mxu0 0
        %363 = vmatprep.mubr.bf16.mxu0 %v248
        %364 = vmatmul.mubr.bf16.gmra.mrb[0].mxu0 %v247
        %v365 = vpop.f32.mrb[0].mxu0
        %v366 = vadd.f32 0.0, %v365
        %v367 = vpop.f32.mrb[0].mxu0
        %v368 = vpop.f32.mrb[0].mxu0
        %v369 = vadd.f32 0.0, %v368
        %v370 = vpop.f32.mrb[0].mxu0
        %371 = vdwg.mxu0
        %p372 = scmp.eq.s32.totalorder %s20, 0
        // Predicated region
        $region29: #{column_parallel_linear_forward.1} parent=27 // pred_check
          %p373 = pneg %p372
        $region30: #{column_parallel_linear_forward.1} parent=27 // pred_check_branch
          %375 = sbr.rel (%p373) target = $region32
        $region31: #{column_parallel_linear_forward.1} parent=27 // pred_region
          %376 = vst [vmem:[#allocation2] sm:$0xff] %v366
          %377 = vst [vmem:[#allocation2 + $0x8] sm:$0xff] %v369
        $region32: #{column_parallel_linear_forward.1} parent=27 // pred_fallthru
          _
        %p378 = scmp.gt.s32.totalorder %s20, 0
        // Predicated region
        $region33: #{column_parallel_linear_forward.1} parent=27 // pred_check
          %p379 = pneg %p378
        $region34: #{column_parallel_linear_forward.1} parent=27 // pred_check_branch
          %381 = sbr.rel (%p379) target = $region36
        $region35: #{column_parallel_linear_forward.1} parent=27 // pred_region
          %v382 = vld [vmem:[#allocation2] sm:$0xff]
          %v383 = vld [vmem:[#allocation2 + $0x8] sm:$0xff]
          %v384 = vadd.f32 %v382, %v366
          %v385 = vadd.f32 %v383, %v369
          %386 = vst [vmem:[#allocation2] sm:$0xff] %v384
          %387 = vst [vmem:[#allocation2 + $0x8] sm:$0xff] %v385
        $region36: #{column_parallel_linear_forward.1} parent=27 // pred_fallthru
          _
        // Predicated region
        $region37: #{column_parallel_linear_forward.1} parent=27 // pred_check
          %p388 = pneg %p372
        $region38: #{column_parallel_linear_forward.1} parent=27 // pred_check_branch
          %390 = sbr.rel (%p388) target = $region40
        $region39: #{column_parallel_linear_forward.1} parent=27 // pred_region
          %v391 = vld [vmem:[#allocation2] sm:$0xff]
          %v392 = vld [vmem:[#allocation2 + $0x8] sm:$0xff]
          %393 = vst [vmem:[%s196] sm:$0xff] %v391
          %394 = vst [vmem:[%s196 + $0x8] sm:$0xff] %v392
        $region40: #{column_parallel_linear_forward.1} parent=27 // pred_fallthru
          _
        %s395 = sand.u32 %s98, 1
        %s396 = sand.u32 %s98, 1
        %s397 = smul.addr %s396, 16
        %s398 = scalar_lea.vmem [#allocation3], %s397
        // Predicated region
        $region41: #{column_parallel_linear_forward.1} parent=27 // pred_check
          %p399 = pneg %p108
        $region42: #{column_parallel_linear_forward.1} parent=27 // pred_check_branch
          %401 = sbr.rel (%p399) target = $region44
        $region43: #{column_parallel_linear_forward.1} parent=27 // pred_region
          %s402 = smul.u32 2, %s18
          %s403 = smul.addr %s402, 2
          %s404 = sadd.s32 %s19, %s403
          %s405 = smul.addr %s404, 8
          %s406 = scalar_lea.vmem %s2, %s405
          // Predicated region
          $region45: #{column_parallel_linear_forward.1} parent=43 // pred_check
            _
          $region46: #{column_parallel_linear_forward.1} parent=43 // pred_check_branch
            %408 = sbr.rel (0) target = $region48
          $region47: #{column_parallel_linear_forward.1} parent=43 // pred_region
            // Predicated region
            $region49: #{column_parallel_linear_forward.1} parent=47 // pred_check
              _
            $region50: #{column_parallel_linear_forward.1} parent=47 // pred_check_branch
              %410 = sbr.rel (0) target = $region52
            $region51: #{column_parallel_linear_forward.1} parent=47 // pred_region
              // Predicated region
              $region64: #{column_parallel_linear_forward.1} parent=51 // pred_check
                _
              $region65: #{column_parallel_linear_forward.1} parent=51 // pred_check_branch
                %427 = sbr.rel (0) target = $region67
              $region66: #{column_parallel_linear_forward.1} parent=51 // pred_region
                loop: start=0, step=1, limit=1
                $region68: #{column_parallel_linear_forward.1} parent=66 // loop_pre_header
                  _
                $region69: #{column_parallel_linear_forward.1} parent=66 // loop_header
                  %s429 = sphi 0, %s433
                  %p430 = scmp.ge.s32.totalorder %s429, 1
                  %s434 = sphi %s398, %s398
                  %s435 = sphi %s406, %s406
                $region70: #{column_parallel_linear_forward.1} parent=66 // loop_header_branch
                  %432 = sbr.rel (%p430) target = $region74
                $region71: #{column_parallel_linear_forward.1} parent=66 // loop_body
                  %v436 = vld [vmem:[%s434] sm:$0xff]
                  %437 = vst [vmem:[%s435] sm:$0xff] %v436
                  %v438 = vld [vmem:[%s434 + $0x8] sm:$0xff]
                  %439 = vst [vmem:[%s435 + $0x10] sm:$0xff] %v438
                $region72: #{column_parallel_linear_forward.1} parent=66 // loop_footer
                  %s433 = sadd.s32 1, %s429
                $region73: #{column_parallel_linear_forward.1} parent=66 // loop_footer_branch
                  %428 = sbr.rel target = $region69
                $region74: #{column_parallel_linear_forward.1} parent=66 // loop_exit
                  _
              $region67: #{column_parallel_linear_forward.1} parent=51 // pred_fallthru
                _
              // Predicated region
              $region75: #{column_parallel_linear_forward.1} parent=51 // pred_check
                _
              $region76: #{column_parallel_linear_forward.1} parent=51 // pred_check_branch
                %441 = sbr.rel target = $region78
              $region77: #{column_parallel_linear_forward.1} parent=51 // pred_region
                _
              $region78: #{column_parallel_linear_forward.1} parent=51 // pred_fallthru
                _
            $region52: #{column_parallel_linear_forward.1} parent=47 // pred_fallthru
              _
            // Predicated region
            $region53: #{column_parallel_linear_forward.1} parent=47 // pred_check
              _
            $region54: #{column_parallel_linear_forward.1} parent=47 // pred_check_branch
              %412 = sbr.rel target = $region56
            $region55: #{column_parallel_linear_forward.1} parent=47 // pred_region
              loop: start=0, step=1, limit=1
              $region57: #{column_parallel_linear_forward.1} parent=55 // loop_pre_header
                _
              $region58: #{column_parallel_linear_forward.1} parent=55 // loop_header
                %s415 = sphi 0, %s419
                %p416 = scmp.ge.s32.totalorder %s415, 1
                %s420 = sphi %s398, %s398
                %s421 = sphi %s406, %s406
              $region59: #{column_parallel_linear_forward.1} parent=55 // loop_header_branch
                %418 = sbr.rel (%p416) target = $region63
              $region60: #{column_parallel_linear_forward.1} parent=55 // loop_body
                %v422 = vld [vmem:[%s420] sm:$0xff]
                %423 = vst [vmem:[%s421] sm:$0xff] %v422
                %v424 = vld [vmem:[%s420 + $0x8] sm:$0xff]
                %425 = vst [vmem:[%s421 + $0x10] sm:$0xff] %v424
              $region61: #{column_parallel_linear_forward.1} parent=55 // loop_footer
                %s419 = sadd.s32 1, %s415
              $region62: #{column_parallel_linear_forward.1} parent=55 // loop_footer_branch
                %414 = sbr.rel target = $region58
              $region63: #{column_parallel_linear_forward.1} parent=55 // loop_exit
                _
            $region56: #{column_parallel_linear_forward.1} parent=47 // pred_fallthru
              _
          $region48: #{column_parallel_linear_forward.1} parent=43 // pred_fallthru
            _
          %442 = vnop
        $region44: #{column_parallel_linear_forward.1} parent=27 // pred_fallthru
          _
      $region28: #{column_parallel_linear_forward.1} parent=5 // pred_fallthru
        _
      %p443 = scmp.le.s32.totalorder 2, %s8
      // Predicated region
      $region79: #{column_parallel_linear_forward.1} parent=5 // pred_check
        %p444 = pneg %p443
      $region80: #{column_parallel_linear_forward.1} parent=5 // pred_check_branch
        %446 = sbr.rel (%p444) target = $region82
      $region81: #{column_parallel_linear_forward.1} parent=5 // pred_region
        %s447 = ssub.s32 %s8, 2
        // Predicated region
        $region83: #{column_parallel_linear_forward.1} parent=81 // pred_check
          %p448 = pneg %p114
        $region84: #{column_parallel_linear_forward.1} parent=81 // pred_check_branch
          %450 = sbr.rel (%p448) target = $region86
        $region85: #{column_parallel_linear_forward.1} parent=81 // pred_region
          %s451 = sand.u32 %s99, 1
          %s452 = sand.u32 %s99, 1
          %s453 = smul.addr %s452, 16
          %s454 = scalar_lea.vmem [#allocation3], %s453
        $region86: #{column_parallel_linear_forward.1} parent=81 // pred_fallthru
          _
      $region82: #{column_parallel_linear_forward.1} parent=5 // pred_fallthru
        _
    $region6: #{column_parallel_linear_forward.1} parent=1 // loop_footer
      %s12 = sadd.s32 1, %s8
    $region7: #{column_parallel_linear_forward.1} parent=1 // loop_footer_branch
      %7 = sbr.rel target = $region3
    $region8: #{column_parallel_linear_forward.1} parent=1 // loop_exit
      _

</llo_original>
